<compile_context>
chip_gen: v7x
topology: tpu7x:2x2x1
jax: 0.10.0
libtpu: 0.0.40
codegen_flags: <defaults>
</compile_context>

<pallas_src>
import functools

import jax
import jax.numpy as jnp
from jax import lax
from jax.experimental import pallas as pl
from jax.experimental.pallas import tpu as pltpu

LANES = 128
SUBLANES = 8
CHUNK = 32  # rows per inner-loop step: 4 f32 vregs / 2 bf16 vregs per input


def _round_up(a, b):
    return (a + b - 1) // b * b


@functools.lru_cache(maxsize=1)
def _chip_generation():
    """Best-effort TPU generation from device_kind (0 == unknown)."""
    try:
        kind = jax.devices()[0].device_kind.lower()
    except Exception:
        return 0
    if "v7" in kind or "7x" in kind:
        return 7
    if "v6" in kind:
        return 6
    if "v5" in kind:
        return 5
    if "v4" in kind:
        return 4
    return 0


def _loss_sums_kernel(x_ref, y_ref, z_ref, sxy_ref, sxz_ref, *,
                      tm, bpc, num_blocks, m_rows, has_tail, has_overshoot):
    c = pl.program_id(0)      # core index (CORE_PARALLEL leading axis on v7x)
    i = pl.program_id(1)      # row-block index within this core's range
    lb = c * bpc + i          # logical (unclamped) block index

    @pl.when(i == 0)
    def _():
        sxy_ref[...] = jnp.zeros_like(sxy_ref)
        sxz_ref[...] = jnp.zeros_like(sxz_ref)

    nchunks = tm // CHUNK

    def accumulate(masked):
        def body(j, carry):
            axy, axz = carry
            r0 = pl.multiple_of(j * CHUNK, CHUNK)
            x = x_ref[pl.ds(r0, CHUNK), :].astype(jnp.float32)
            y = y_ref[pl.ds(r0, CHUNK), :].astype(jnp.float32)
            z = z_ref[pl.ds(r0, CHUNK), :].astype(jnp.float32)
            dxy = x - y
            dxz = x - z
            sq_xy = dxy * dxy
            sq_xz = dxz * dxz
            if masked:
                # Rows past the real data (partial tail block) contribute 0.
                row = lb * tm + r0 + lax.broadcasted_iota(
                    jnp.int32, (CHUNK, 1), 0)
                valid = row < m_rows
                sq_xy = jnp.where(valid, sq_xy, 0.0)
                sq_xz = jnp.where(valid, sq_xz, 0.0)
            return axy + sq_xy, axz + sq_xz

        zero = jnp.zeros((CHUNK, LANES), jnp.float32)
        axy, axz = lax.fori_loop(0, nchunks, body, (zero, zero),
                                 unroll=4 if nchunks >= 4 else None)
        # Fold the small (32,128) chunk accumulator down to the lane-dense
        # (8,128) resident output (pure VPU vreg adds).
        sxy_ref[...] += axy.reshape(CHUNK // SUBLANES, SUBLANES, LANES).sum(axis=0)
        sxz_ref[...] += axz.reshape(CHUNK // SUBLANES, SUBLANES, LANES).sum(axis=0)

    if not has_tail and not has_overshoot:
        # Fast path: every block is full -> no masks anywhere.
        accumulate(masked=False)
    else:
        full_limit = (num_blocks - 1) if has_tail else num_blocks

        @pl.when(lb < full_limit)
        def _():
            accumulate(masked=False)

        if has_tail:
            @pl.when(lb == num_blocks - 1)
            def _():
                accumulate(masked=True)
        # Overshoot blocks (lb >= num_blocks, from the clamped core split):
        # skipped entirely; their DMA target was clamped in the index map.


def _sq_diff_partials(x2d, y2d, z2d, *, tm, ncores, bpc, num_blocks,
                      has_tail, has_overshoot, dim_sems, vmem_limit):
    """x2d/y2d/z2d: (M, 128) native dtype. Returns (sum_xy, sum_xz) f32."""
    m_rows = x2d.shape[0]

    def in_map(c, i):
        # Clamp so the DMA always targets an in-bounds block; overshoot blocks
        # are skipped by the in-kernel pl.when gating.
        return (jnp.minimum(c * bpc + i, num_blocks - 1), 0)

    in_spec = pl.BlockSpec((tm, LANES), in_map)
    # One resident (8, 128) accumulator per core; lane-dense stores.
    out_spec = pl.BlockSpec((None, SUBLANES, LANES), lambda c, i: (c, 0, 0))

    kernel = functools.partial(
        _loss_sums_kernel, tm=tm, bpc=bpc, num_blocks=num_blocks,
        m_rows=m_rows, has_tail=has_tail, has_overshoot=has_overshoot)

    sxy, sxz = pl.pallas_call(
        kernel,
        out_shape=(
            jax.ShapeDtypeStruct((ncores, SUBLANES, LANES), jnp.float32),
            jax.ShapeDtypeStruct((ncores, SUBLANES, LANES), jnp.float32),
        ),
        grid_spec=pltpu.PrefetchScalarGridSpec(
            num_scalar_prefetch=0,
            grid=(ncores, bpc),
            in_specs=[in_spec, in_spec, in_spec],
            out_specs=[out_spec, out_spec],
        ),
        compiler_params=pltpu.CompilerParams(
            dimension_semantics=dim_sems,
            vmem_limit_bytes=vmem_limit),
    )(x2d, y2d, z2d)

    # Final cheap cross-lane / cross-core reduction in plain JAX.
    return jnp.sum(sxy), jnp.sum(sxz)


@functools.partial(jax.jit, static_argnames=("mode",))
def loss_forward(x, y, z, n, mode="AE1"):
    assert mode in ("AE1", "AE2")
    count = x.size  # true element count

    # Flatten in native dtype (no f32 materialization in HBM); upcast in-kernel.
    xf = x.reshape(-1)
    yf = y.reshape(-1)
    zf = z.reshape(-1)

    size = xf.shape[0]
    pad = (-size) % LANES
    if pad:
        # TODO(synk): handle size % 128 != 0 in-kernel (1-D blocking + element
        # mask) instead of this jnp.pad copy, which roughly doubles HBM
        # traffic for non-lane-aligned element counts.
        xf = jnp.pad(xf, (0, pad))
        yf = jnp.pad(yf, (0, pad))
        zf = jnp.pad(zf, (0, pad))
    m_rows = (size + pad) // LANES
    x2d = xf.reshape(m_rows, LANES)
    y2d = yf.reshape(m_rows, LANES)
    z2d = zf.reshape(m_rows, LANES)

    gen = _chip_generation()
    itemsize = jnp.dtype(x.dtype).itemsize

    # Dtype-aware row tile: ~2 MiB per input block on v6e/v7x, ~1 MiB on
    # v5e/unknown.  f32 -> 4096/2048 rows, bf16 -> 8192/4096 rows.  With the
    # chunked inner loop the only big VMEM users are the 3 double-buffered
    # input blocks (<= 12 MiB).
    target_block_bytes = (2 << 20) if gen >= 6 else (1 << 20)
    tm_cap = max(CHUNK, (target_block_bytes // (LANES * itemsize)) // CHUNK * CHUNK)
    tm = min(tm_cap, _round_up(m_rows, CHUNK))

    num_blocks = pl.cdiv(m_rows, tm)

    # 2-way TensorCore split only on v7x (2 TCs/chip); v5e/v6e get a single
    # outer step so block-aligned inputs never pay masking/overshoot.
    ncores = 2 if (gen >= 7 and num_blocks > 1) else 1
    bpc = pl.cdiv(num_blocks, ncores)
    has_tail = (m_rows % tm) != 0
    has_overshoot = (ncores * bpc) > num_blocks

    if ncores == 2:
        core_par = getattr(pltpu, "CORE_PARALLEL", None)
        if core_par is not None:
            dim_sems = (core_par, pltpu.ARBITRARY)
        else:
            dim_sems = ("parallel", "arbitrary")
    else:
        dim_sems = ("arbitrary", "arbitrary")

    vmem_limit = (48 << 20) if gen >= 6 else None

    sum_xy, sum_xz = _sq_diff_partials(
        x2d, y2d, z2d, tm=tm, ncores=ncores, bpc=bpc, num_blocks=num_blocks,
        has_tail=has_tail, has_overshoot=has_overshoot,
        dim_sems=dim_sems, vmem_limit=vmem_limit)

    mean_xy = sum_xy / jnp.float32(count)
    mean_xz = sum_xz / jnp.float32(count)

    n = jnp.asarray(n, jnp.float32)
    w1 = 1.0 / n
    w2 = -1.0 / n + 1.0
    if mode == "AE1":
        return w1 * mean_xy + w2 * mean_xz
    else:
        return w1 * mean_xy - w2 * mean_xz


def _reference(x, y, z, n, mode):
    m1 = jnp.mean((x.astype(jnp.float32) - y.astype(jnp.float32)) ** 2)
    m2 = jnp.mean((x.astype(jnp.float32) - z.astype(jnp.float32)) ** 2)
    n = jnp.float32(n)
    if mode == "AE1":
        return 1.0 / n * m1 + (-1.0 / n + 1.0) * m2
    return 1.0 / n * m1 - (-1.0 / n + 1.0) * m2


if __name__ == "__main__":
    key = jax.random.PRNGKey(0)
    n = 4.0
    ok = True

    # Small NCHW-like case (single partial block -> exercises tail masking).
    kx, ky, kz = jax.random.split(key, 3)
    shape = (2, 4, 16, 16)
    x = jax.random.normal(kx, shape, dtype=jnp.float32)
    y = jax.random.normal(ky, shape, dtype=jnp.float32)
    z = jax.random.normal(kz, shape, dtype=jnp.float32)
    for mode in ("AE1", "AE2"):
        out = loss_forward(x, y, z, n, mode=mode)
        jax.block_until_ready(out)
        ref = _reference(x, y, z, n, mode)
        ok &= bool(jnp.allclose(out, ref, rtol=1e-5, atol=1e-5))

    # Larger case exercising multi-block grids / core split / tail gating and
    # native bf16 streaming.
    kx2, ky2, kz2 = jax.random.split(jax.random.PRNGKey(1), 3)
    shape2 = (2, 16, 128, 130)
    xb = jax.random.normal(kx2, shape2, dtype=jnp.bfloat16)
    yb = jax.random.normal(ky2, shape2, dtype=jnp.bfloat16)
    zb = jax.random.normal(kz2, shape2, dtype=jnp.bfloat16)
    for mode in ("AE1", "AE2"):
        out = loss_forward(xb, yb, zb, n, mode=mode)
        jax.block_until_ready(out)
        ref = _reference(xb, yb, zb, n, mode)
        ok &= bool(jnp.allclose(out, ref, rtol=2e-3, atol=2e-3))

    if ok:
        print("KERNEL_OK")
    else:
        print("KERNEL_MISMATCH")
</pallas_src>

<mosaic_0001>
module attributes {stable_mosaic.version = 11 : i64} {
  func.func @_loss_sums_kernel(%arg0: i32, %arg1: i32, %arg2: memref<32x128xf32, #tpu.memory_space<vmem>>, %arg3: memref<32x128xf32, #tpu.memory_space<vmem>>, %arg4: memref<32x128xf32, #tpu.memory_space<vmem>>, %arg5: memref<1x8x128xf32, #tpu.memory_space<vmem>>, %arg6: memref<1x8x128xf32, #tpu.memory_space<vmem>>) attributes {dimension_semantics = [#tpu.dimension_semantics<arbitrary>, #tpu.dimension_semantics<arbitrary>], iteration_bounds = array<i64: 1, 1>, scalar_prefetch = 0 : i64, scratch_operands = 0 : i64, tpu.core_type = #tpu.core_type<tc>, window_params = [{transform_indices = @transform_0, window_bounds = array<i64: 32, 128>}, {transform_indices = @transform_1, window_bounds = array<i64: 32, 128>}, {transform_indices = @transform_2, window_bounds = array<i64: 32, 128>}, {transform_indices = @transform_3, window_bounds = array<i64: 1, 8, 128>}, {transform_indices = @transform_4, window_bounds = array<i64: 1, 8, 128>}]} {
    %c1_i32 = arith.constant 1 : i32
    %0 = arith.muli %arg0, %c1_i32 : i32
    %1 = arith.addi %0, %arg1 : i32
    %c0_i32 = arith.constant 0 : i32
    %2 = arith.cmpi eq, %arg1, %c0_i32 : i32
    %3 = arith.extui %2 : i1 to i32
    %c0_i32_0 = arith.constant 0 : i32
    %4 = arith.cmpi ne, %3, %c0_i32_0 : i32
    scf.if %4 {
      %cst = arith.constant 0.000000e+00 : f32
      %11 = vector.broadcast %cst : f32 to vector<8x128xf32>
      %c0 = arith.constant 0 : index
      %c0_5 = arith.constant 0 : index
      %c0_6 = arith.constant 0 : index
      %12 = vector.load %arg5[%c0, %c0_5, %c0_6] : memref<1x8x128xf32, #tpu.memory_space<vmem>>, vector<1x8x128xf32>
      %13 = vector.shape_cast %12 : vector<1x8x128xf32> to vector<8x128xf32>
      %14 = vector.shape_cast %11 : vector<8x128xf32> to vector<1x8x128xf32>
      tpu.vector_store %arg5[%c0, %c0_5, %c0_6], %14 {strides = array<i32>} : memref<1x8x128xf32, #tpu.memory_space<vmem>>, vector<1x8x128xf32>,
      %cst_7 = arith.constant 0.000000e+00 : f32
      %15 = vector.broadcast %cst_7 : f32 to vector<8x128xf32>
      %c0_8 = arith.constant 0 : index
      %c0_9 = arith.constant 0 : index
      %c0_10 = arith.constant 0 : index
      %16 = vector.load %arg6[%c0_8, %c0_9, %c0_10] : memref<1x8x128xf32, #tpu.memory_space<vmem>>, vector<1x8x128xf32>
      %17 = vector.shape_cast %16 : vector<1x8x128xf32> to vector<8x128xf32>
      %18 = vector.shape_cast %15 : vector<8x128xf32> to vector<1x8x128xf32>
      tpu.vector_store %arg6[%c0_8, %c0_9, %c0_10], %18 {strides = array<i32>} : memref<1x8x128xf32, #tpu.memory_space<vmem>>, vector<1x8x128xf32>,
    } else {
    }
    %c0_i32_1 = arith.constant 0 : i32
    %5 = arith.cmpi slt, %1, %c0_i32_1 : i32
    %6 = arith.extui %5 : i1 to i32
    %c0_i32_2 = arith.constant 0 : i32
    %7 = arith.cmpi ne, %6, %c0_i32_2 : i32
    scf.if %7 {
      %cst = arith.constant 0.000000e+00 : f32
      %11 = vector.broadcast %cst : f32 to vector<32x128xf32>
      %c0_i32_5 = arith.constant 0 : i32
      %c32_i32 = arith.constant 32 : i32
      %12 = arith.muli %c0_i32_5, %c32_i32 : i32
      %13 = tpu.assume_multiple %12, 32 : i32
      %14 = arith.index_cast %13 : i32 to index
      %c0 = arith.constant 0 : index
      %15 = vector.load %arg2[%14, %c0] : memref<32x128xf32, #tpu.memory_space<vmem>>, vector<32x128xf32>
      %16 = arith.index_cast %13 : i32 to index
      %c0_6 = arith.constant 0 : index
      %17 = vector.load %arg3[%16, %c0_6] : memref<32x128xf32, #tpu.memory_space<vmem>>, vector<32x128xf32>
      %18 = arith.index_cast %13 : i32 to index
      %c0_7 = arith.constant 0 : index
      %19 = vector.load %arg4[%18, %c0_7] : memref<32x128xf32, #tpu.memory_space<vmem>>, vector<32x128xf32>
      %20 = arith.subf %15, %17 : vector<32x128xf32>
      %21 = arith.subf %15, %19 : vector<32x128xf32>
      %22 = arith.mulf %20, %20 : vector<32x128xf32>
      %23 = arith.mulf %21, %21 : vector<32x128xf32>
      %24 = arith.addf %11, %22 : vector<32x128xf32>
      %25 = arith.addf %11, %23 : vector<32x128xf32>
      %c1_i32_8 = arith.constant 1 : i32
      %c0_9 = arith.constant 0 : index
      %c0_10 = arith.constant 0 : index
      %c0_11 = arith.constant 0 : index
      %26 = vector.load %arg5[%c0_9, %c0_10, %c0_11] : memref<1x8x128xf32, #tpu.memory_space<vmem>>, vector<1x8x128xf32>
      %27 = vector.shape_cast %26 : vector<1x8x128xf32> to vector<8x128xf32>
      %28 = vector.shape_cast %24 : vector<32x128xf32> to vector<4x8x128xf32>
      %cst_12 = arith.constant dense<0.000000e+00> : vector<8x128xf32>
      %29 = vector.multi_reduction <add>, %28, %cst_12 [0] : vector<4x8x128xf32> to vector<8x128xf32>
      %30 = arith.addf %27, %29 : vector<8x128xf32>
      %c0_13 = arith.constant 0 : index
      %c0_14 = arith.constant 0 : index
      %c0_15 = arith.constant 0 : index
      %31 = vector.load %arg5[%c0_13, %c0_14, %c0_15] : memref<1x8x128xf32, #tpu.memory_space<vmem>>, vector<1x8x128xf32>
      %32 = vector.shape_cast %31 : vector<1x8x128xf32> to vector<8x128xf32>
      %33 = vector.shape_cast %30 : vector<8x128xf32> to vector<1x8x128xf32>
      tpu.vector_store %arg5[%c0_13, %c0_14, %c0_15], %33 {strides = array<i32>} : memref<1x8x128xf32, #tpu.memory_space<vmem>>, vector<1x8x128xf32>,
      %c0_16 = arith.constant 0 : index
      %c0_17 = arith.constant 0 : index
      %c0_18 = arith.constant 0 : index
      %34 = vector.load %arg6[%c0_16, %c0_17, %c0_18] : memref<1x8x128xf32, #tpu.memory_space<vmem>>, vector<1x8x128xf32>
      %35 = vector.shape_cast %34 : vector<1x8x128xf32> to vector<8x128xf32>
      %36 = vector.shape_cast %25 : vector<32x128xf32> to vector<4x8x128xf32>
      %cst_19 = arith.constant dense<0.000000e+00> : vector<8x128xf32>
      %37 = vector.multi_reduction <add>, %36, %cst_19 [0] : vector<4x8x128xf32> to vector<8x128xf32>
      %38 = arith.addf %35, %37 : vector<8x128xf32>
      %c0_20 = arith.constant 0 : index
      %c0_21 = arith.constant 0 : index
      %c0_22 = arith.constant 0 : index
      %39 = vector.load %arg6[%c0_20, %c0_21, %c0_22] : memref<1x8x128xf32, #tpu.memory_space<vmem>>, vector<1x8x128xf32>
      %40 = vector.shape_cast %39 : vector<1x8x128xf32> to vector<8x128xf32>
      %41 = vector.shape_cast %38 : vector<8x128xf32> to vector<1x8x128xf32>
      tpu.vector_store %arg6[%c0_20, %c0_21, %c0_22], %41 {strides = array<i32>} : memref<1x8x128xf32, #tpu.memory_space<vmem>>, vector<1x8x128xf32>,
    } else {
    }
    %c0_i32_3 = arith.constant 0 : i32
    %8 = arith.cmpi eq, %1, %c0_i32_3 : i32
    %9 = arith.extui %8 : i1 to i32
    %c0_i32_4 = arith.constant 0 : i32
    %10 = arith.cmpi ne, %9, %c0_i32_4 : i32
    scf.if %10 {
      %cst = arith.constant 0.000000e+00 : f32
      %11 = vector.broadcast %cst : f32 to vector<32x128xf32>
      %c0_i32_5 = arith.constant 0 : i32
      %c32_i32 = arith.constant 32 : i32
      %12 = arith.muli %c0_i32_5, %c32_i32 : i32
      %13 = tpu.assume_multiple %12, 32 : i32
      %14 = arith.index_cast %13 : i32 to index
      %c0 = arith.constant 0 : index
      %15 = vector.load %arg2[%14, %c0] : memref<32x128xf32, #tpu.memory_space<vmem>>, vector<32x128xf32>
      %16 = arith.index_cast %13 : i32 to index
      %c0_6 = arith.constant 0 : index
      %17 = vector.load %arg3[%16, %c0_6] : memref<32x128xf32, #tpu.memory_space<vmem>>, vector<32x128xf32>
      %18 = arith.index_cast %13 : i32 to index
      %c0_7 = arith.constant 0 : index
      %19 = vector.load %arg4[%18, %c0_7] : memref<32x128xf32, #tpu.memory_space<vmem>>, vector<32x128xf32>
      %20 = arith.subf %15, %17 : vector<32x128xf32>
      %21 = arith.subf %15, %19 : vector<32x128xf32>
      %22 = arith.mulf %20, %20 : vector<32x128xf32>
      %23 = arith.mulf %21, %21 : vector<32x128xf32>
      %c32_i32_8 = arith.constant 32 : i32
      %24 = arith.muli %1, %c32_i32_8 : i32
      %25 = arith.addi %24, %13 : i32
      %26 = tpu.iota {dimensions = array<i32: 0>} : vector<32x1xi32>
      %27 = vector.broadcast %25 : i32 to vector<32x1xi32>
      %28 = arith.addi %27, %26 : vector<32x1xi32>
      %c16_i32 = arith.constant 16 : i32
      %29 = vector.broadcast %c16_i32 : i32 to vector<32x1xi32>
      %30 = arith.cmpi slt, %28, %29 : vector<32x1xi32>
      %cst_9 = arith.constant 0.000000e+00 : f32
      %31 = vector.shape_cast %30 : vector<32x1xi1> to vector<32x1xi1>
      %32 = vector.broadcast %31 : vector<32x1xi1> to vector<32x128xi1>
      %33 = vector.broadcast %cst_9 : f32 to vector<32x128xf32>
      %34 = arith.select %32, %22, %33 : vector<32x128xi1>, vector<32x128xf32>
      %cst_10 = arith.constant 0.000000e+00 : f32
      %35 = vector.shape_cast %30 : vector<32x1xi1> to vector<32x1xi1>
      %36 = vector.broadcast %35 : vector<32x1xi1> to vector<32x128xi1>
      %37 = vector.broadcast %cst_10 : f32 to vector<32x128xf32>
      %38 = arith.select %36, %23, %37 : vector<32x128xi1>, vector<32x128xf32>
      %39 = arith.addf %11, %34 : vector<32x128xf32>
      %40 = arith.addf %11, %38 : vector<32x128xf32>
      %c1_i32_11 = arith.constant 1 : i32
      %c0_12 = arith.constant 0 : index
      %c0_13 = arith.constant 0 : index
      %c0_14 = arith.constant 0 : index
      %41 = vector.load %arg5[%c0_12, %c0_13, %c0_14] : memref<1x8x128xf32, #tpu.memory_space<vmem>>, vector<1x8x128xf32>
      %42 = vector.shape_cast %41 : vector<1x8x128xf32> to vector<8x128xf32>
      %43 = vector.shape_cast %39 : vector<32x128xf32> to vector<4x8x128xf32>
      %cst_15 = arith.constant dense<0.000000e+00> : vector<8x128xf32>
      %44 = vector.multi_reduction <add>, %43, %cst_15 [0] : vector<4x8x128xf32> to vector<8x128xf32>
      %45 = arith.addf %42, %44 : vector<8x128xf32>
      %c0_16 = arith.constant 0 : index
      %c0_17 = arith.constant 0 : index
      %c0_18 = arith.constant 0 : index
      %46 = vector.load %arg5[%c0_16, %c0_17, %c0_18] : memref<1x8x128xf32, #tpu.memory_space<vmem>>, vector<1x8x128xf32>
      %47 = vector.shape_cast %46 : vector<1x8x128xf32> to vector<8x128xf32>
      %48 = vector.shape_cast %45 : vector<8x128xf32> to vector<1x8x128xf32>
      tpu.vector_store %arg5[%c0_16, %c0_17, %c0_18], %48 {strides = array<i32>} : memref<1x8x128xf32, #tpu.memory_space<vmem>>, vector<1x8x128xf32>,
      %c0_19 = arith.constant 0 : index
      %c0_20 = arith.constant 0 : index
      %c0_21 = arith.constant 0 : index
      %49 = vector.load %arg6[%c0_19, %c0_20, %c0_21] : memref<1x8x128xf32, #tpu.memory_space<vmem>>, vector<1x8x128xf32>
      %50 = vector.shape_cast %49 : vector<1x8x128xf32> to vector<8x128xf32>
      %51 = vector.shape_cast %40 : vector<32x128xf32> to vector<4x8x128xf32>
      %cst_22 = arith.constant dense<0.000000e+00> : vector<8x128xf32>
      %52 = vector.multi_reduction <add>, %51, %cst_22 [0] : vector<4x8x128xf32> to vector<8x128xf32>
      %53 = arith.addf %50, %52 : vector<8x128xf32>
      %c0_23 = arith.constant 0 : index
      %c0_24 = arith.constant 0 : index
      %c0_25 = arith.constant 0 : index
      %54 = vector.load %arg6[%c0_23, %c0_24, %c0_25] : memref<1x8x128xf32, #tpu.memory_space<vmem>>, vector<1x8x128xf32>
      %55 = vector.shape_cast %54 : vector<1x8x128xf32> to vector<8x128xf32>
      %56 = vector.shape_cast %53 : vector<8x128xf32> to vector<1x8x128xf32>
      tpu.vector_store %arg6[%c0_23, %c0_24, %c0_25], %56 {strides = array<i32>} : memref<1x8x128xf32, #tpu.memory_space<vmem>>, vector<1x8x128xf32>,
    } else {
    }
    return
  }
  func.func @transform_0(%arg0: i32, %arg1: i32) -> (i32, i32) {
    %c1_i32 = arith.constant 1 : i32
    %0 = arith.muli %arg0, %c1_i32 : i32
    %1 = arith.addi %0, %arg1 : i32
    %c0_i32 = arith.constant 0 : i32
    %2 = arith.minsi %1, %c0_i32 : i32
    %c0_i32_0 = arith.constant 0 : i32
    %c0_i32_1 = arith.constant 0 : i32
    return %2, %c0_i32_0 : i32, i32
  }
  func.func @transform_1(%arg0: i32, %arg1: i32) -> (i32, i32) {
    %c1_i32 = arith.constant 1 : i32
    %0 = arith.muli %arg0, %c1_i32 : i32
    %1 = arith.addi %0, %arg1 : i32
    %c0_i32 = arith.constant 0 : i32
    %2 = arith.minsi %1, %c0_i32 : i32
    %c0_i32_0 = arith.constant 0 : i32
    %c0_i32_1 = arith.constant 0 : i32
    return %2, %c0_i32_0 : i32, i32
  }
  func.func @transform_2(%arg0: i32, %arg1: i32) -> (i32, i32) {
    %c1_i32 = arith.constant 1 : i32
    %0 = arith.muli %arg0, %c1_i32 : i32
    %1 = arith.addi %0, %arg1 : i32
    %c0_i32 = arith.constant 0 : i32
    %2 = arith.minsi %1, %c0_i32 : i32
    %c0_i32_0 = arith.constant 0 : i32
    %c0_i32_1 = arith.constant 0 : i32
    return %2, %c0_i32_0 : i32, i32
  }
  func.func @transform_3(%arg0: i32, %arg1: i32) -> (i32, i32, i32) {
    %c0_i32 = arith.constant 0 : i32
    %c0_i32_0 = arith.constant 0 : i32
    %c0_i32_1 = arith.constant 0 : i32
    return %arg0, %c0_i32, %c0_i32_0 : i32, i32, i32
  }
  func.func @transform_4(%arg0: i32, %arg1: i32) -> (i32, i32, i32) {
    %c0_i32 = arith.constant 0 : i32
    %c0_i32_0 = arith.constant 0 : i32
    %c0_i32_1 = arith.constant 0 : i32
    return %arg0, %c0_i32, %c0_i32_0 : i32, i32, i32
  }
}

</mosaic_0001>

<llo_original>
// kernel: loss_forward.1
$region0: #{loss_forward.1}
  #allocation0 [shape = 'u32[]', space=smem, size = 0x4, offset = 0x4, fixed_abs, tag = 'smem constant byte address 0x4 - core index']
  #allocation1 [shape = 'u32[144,128]{1,0:T(1,128)}', space=vmem, size = 0x12000, scoped, tag = 'internal scratch']
  %s0 = inlined_call_operand.vmem [shape: f32[16,128], index: 0, kind: input, shape index: {}]
  %s1 = inlined_call_operand.vmem [shape: f32[16,128], index: 1, kind: input, shape index: {}]
  %s2 = inlined_call_operand.vmem [shape: f32[16,128], index: 2, kind: input, shape index: {}]
  %s3 = inlined_call_operand.vmem [shape: f32[1,8,128], index: 3, kind: output, shape index: {0}]
  %s4 = inlined_call_operand.vmem [shape: f32[1,8,128], index: 4, kind: output, shape index: {1}]
  %5 = xla_tuple %s3, %s4
  %s6 = sld [smem:[#allocation0]]
  $region42: #{loss_forward.1} parent=0
    _
  %s8 = ssub.s32 1, %s6
  %s9 = scalar_select 0, %s8, %s6
  // Predicated region
  $region2: #{loss_forward.1} parent=0 // pred_check
    _
  $region3: #{loss_forward.1} parent=0 // pred_check_branch
    %11 = sbr.rel (0) target = $region5
  $region4: #{loss_forward.1} parent=0 // pred_region
    %s12 = sadd.s32 0, 0
    %p13 = scmp.lt.s32.totalorder %s12, 0
    %s14 = scalar_select %p13, %s12, 0
    %s15 = smul.u32 4, %s14
    %s16 = ssub.s32 2, %s15
    %s17 = smul.u32 128, %s16
    %p18 = scmp.lt.s32.totalorder %s15, 1
    %s19 = scalar_select %p18, %s15, 1
    %s20 = smul.addr %s19, 8
    %s21 = scalar_lea.vmem %s0, %s20
    %s22 = sadd.s32 0, 0
    %p23 = scmp.lt.s32.totalorder %s22, 0
    %s24 = scalar_select %p23, %s22, 0
    %s25 = smul.u32 4, %s24
    %s26 = ssub.s32 2, %s25
    %s27 = smul.u32 128, %s26
  $region5: #{loss_forward.1} parent=0 // pred_fallthru
    _
  // Predicated region
  $region6: #{loss_forward.1} parent=0 // pred_check
    _
  $region7: #{loss_forward.1} parent=0 // pred_check_branch
    %29 = sbr.rel (0) target = $region9
  $region8: #{loss_forward.1} parent=0 // pred_region
    %s30 = sadd.s32 0, 0
    %p31 = scmp.lt.s32.totalorder %s30, 0
    %s32 = scalar_select %p31, %s30, 0
    %s33 = smul.u32 4, %s32
    %s34 = ssub.s32 2, %s33
    %s35 = smul.u32 128, %s34
    %p36 = scmp.lt.s32.totalorder %s33, 1
    %s37 = scalar_select %p36, %s33, 1
    %s38 = smul.addr %s37, 8
    %s39 = scalar_lea.vmem %s1, %s38
    %s40 = sadd.s32 0, 0
    %p41 = scmp.lt.s32.totalorder %s40, 0
    %s42 = scalar_select %p41, %s40, 0
    %s43 = smul.u32 4, %s42
    %s44 = ssub.s32 2, %s43
    %s45 = smul.u32 128, %s44
  $region9: #{loss_forward.1} parent=0 // pred_fallthru
    _
  // Predicated region
  $region10: #{loss_forward.1} parent=0 // pred_check
    _
  $region11: #{loss_forward.1} parent=0 // pred_check_branch
    %47 = sbr.rel (0) target = $region13
  $region12: #{loss_forward.1} parent=0 // pred_region
    %s48 = sadd.s32 0, 0
    %p49 = scmp.lt.s32.totalorder %s48, 0
    %s50 = scalar_select %p49, %s48, 0
    %s51 = smul.u32 4, %s50
    %s52 = ssub.s32 2, %s51
    %s53 = smul.u32 128, %s52
    %p54 = scmp.lt.s32.totalorder %s51, 1
    %s55 = scalar_select %p54, %s51, 1
    %s56 = smul.addr %s55, 8
    %s57 = scalar_lea.vmem %s2, %s56
    %s58 = sadd.s32 0, 0
    %p59 = scmp.lt.s32.totalorder %s58, 0
    %s60 = scalar_select %p59, %s58, 0
    %s61 = smul.u32 4, %s60
    %s62 = ssub.s32 2, %s61
    %s63 = smul.u32 128, %s62
  $region13: #{loss_forward.1} parent=0 // pred_fallthru
    _
  %s64 = sadd.s32 0, 0
  %p65 = scmp.lt.s32.totalorder %s64, 0
  %s66 = scalar_select %p65, %s64, 0
  %s67 = smul.u32 4, %s66
  %s68 = ssub.s32 2, %s67
  %s69 = smul.u32 128, %s68
  %p70 = scmp.lt.s32.totalorder %s67, 1
  %s71 = scalar_select %p70, %s67, 1
  %s72 = smul.addr %s71, 8
  %s73 = scalar_lea.vmem %s0, %s72
  %s74 = sadd.s32 0, 0
  %p75 = scmp.lt.s32.totalorder %s74, 0
  %s76 = scalar_select %p75, %s74, 0
  %s77 = smul.u32 4, %s76
  %s78 = ssub.s32 2, %s77
  %s79 = smul.u32 128, %s78
  %p80 = scmp.lt.s32.totalorder %s77, 1
  %s81 = scalar_select %p80, %s77, 1
  %s82 = smul.addr %s81, 8
  %s83 = scalar_lea.vmem %s1, %s82
  %s84 = sadd.s32 0, 0
  %p85 = scmp.lt.s32.totalorder %s84, 0
  %s86 = scalar_select %p85, %s84, 0
  %s87 = smul.u32 4, %s86
  %s88 = ssub.s32 2, %s87
  %s89 = smul.u32 128, %s88
  %p90 = scmp.lt.s32.totalorder %s87, 1
  %s91 = scalar_select %p90, %s87, 1
  %s92 = smul.addr %s91, 8
  %s93 = scalar_lea.vmem %s2, %s92
  %s94 = sadd.s32 0, 0
  %p95 = scmp.lt.s32.totalorder %s94, 0
  %s96 = scalar_select %p95, %s94, 0
  %s97 = smul.u32 4, %s96
  %s98 = ssub.s32 2, %s97
  %s99 = smul.u32 128, %s98
  %p100 = scmp.lt.s32.totalorder %s97, 1
  %s101 = scalar_select %p100, %s97, 1
  %s102 = smul.addr %s101, 8
  %s103 = scalar_lea.vmem %s0, %s102
  %s104 = sadd.s32 0, 0
  %p105 = scmp.lt.s32.totalorder %s104, 0
  %s106 = scalar_select %p105, %s104, 0
  %s107 = smul.u32 4, %s106
  %s108 = ssub.s32 2, %s107
  %s109 = smul.u32 128, %s108
  %s110 = sadd.s32 0, 0
  %p111 = scmp.lt.s32.totalorder %s110, 0
  %s112 = scalar_select %p111, %s110, 0
  %s113 = smul.u32 4, %s112
  %s114 = ssub.s32 2, %s113
  %s115 = smul.u32 128, %s114
  %p116 = scmp.lt.s32.totalorder %s113, 1
  %s117 = scalar_select %p116, %s113, 1
  %s118 = smul.addr %s117, 8
  %s119 = scalar_lea.vmem %s1, %s118
  %s120 = sadd.s32 0, 0
  %p121 = scmp.lt.s32.totalorder %s120, 0
  %s122 = scalar_select %p121, %s120, 0
  %s123 = smul.u32 4, %s122
  %s124 = ssub.s32 2, %s123
  %s125 = smul.u32 128, %s124
  %s126 = sadd.s32 0, 0
  %p127 = scmp.lt.s32.totalorder %s126, 0
  %s128 = scalar_select %p127, %s126, 0
  %s129 = smul.u32 4, %s128
  %s130 = ssub.s32 2, %s129
  %s131 = smul.u32 128, %s130
  %p132 = scmp.lt.s32.totalorder %s129, 1
  %s133 = scalar_select %p132, %s129, 1
  %s134 = smul.addr %s133, 8
  %s135 = scalar_lea.vmem %s2, %s134
  %s136 = sadd.s32 0, 0
  %p137 = scmp.lt.s32.totalorder %s136, 0
  %s138 = scalar_select %p137, %s136, 0
  %s139 = smul.u32 4, %s138
  %s140 = ssub.s32 2, %s139
  %s141 = smul.u32 128, %s140
  %s142 = sadd.s32 0, 0
  %p143 = scmp.eq.s32.totalorder 0, 0
  // Predicated region
  $region14: #{loss_forward.1} parent=0 // pred_check
    %p144 = pneg %p143
  $region15: #{loss_forward.1} parent=0 // pred_check_branch
    %146 = sbr.rel (%p144) target = $region17
  $region16: #{loss_forward.1} parent=0 // pred_region
    %147 = vst [vmem:[%s3] sm:$0xff] 0.0
    %148 = vst [vmem:[%s4] sm:$0xff] 0.0
  $region17: #{loss_forward.1} parent=0 // pred_fallthru
    _
  %p149 = scmp.lt.s32.totalorder %s142, 0
  // Predicated region
  $region18: #{loss_forward.1} parent=0 // pred_check
    %p150 = pneg %p149
  $region19: #{loss_forward.1} parent=0 // pred_check_branch
    %152 = sbr.rel (%p150) target = $region21
  $region20: #{loss_forward.1} parent=0 // pred_region
    %v153 = vld [vmem:[%s103] sm:$0xff]
    %v154 = vld [vmem:[%s103 + $0x8] sm:$0xff]
    %v155 = vld [vmem:[%s103 + $0x10] sm:$0xff]
    %v156 = vld [vmem:[%s103 + $0x18] sm:$0xff]
    %v157 = vld [vmem:[%s119] sm:$0xff]
    %v158 = vld [vmem:[%s119 + $0x8] sm:$0xff]
    %v159 = vld [vmem:[%s119 + $0x10] sm:$0xff]
    %v160 = vld [vmem:[%s119 + $0x18] sm:$0xff]
    %v161 = vld [vmem:[%s135] sm:$0xff]
    %v162 = vld [vmem:[%s135 + $0x8] sm:$0xff]
    %v163 = vld [vmem:[%s135 + $0x10] sm:$0xff]
    %v164 = vld [vmem:[%s135 + $0x18] sm:$0xff]
    %v165 = vsub.f32 %v153, %v157
    %v166 = vsub.f32 %v154, %v158
    %v167 = vsub.f32 %v155, %v159
    %v168 = vsub.f32 %v156, %v160
    %v169 = vsub.f32 %v153, %v161
    %v170 = vsub.f32 %v154, %v162
    %v171 = vsub.f32 %v155, %v163
    %v172 = vsub.f32 %v156, %v164
    %v173 = vmul.f32 %v165, %v165
    %v174 = vmul.f32 %v166, %v166
    %v175 = vmul.f32 %v167, %v167
    %v176 = vmul.f32 %v168, %v168
    %v177 = vmul.f32 %v169, %v169
    %v178 = vmul.f32 %v170, %v170
    %v179 = vmul.f32 %v171, %v171
    %v180 = vmul.f32 %v172, %v172
    %v181 = vadd.f32 %v173, 0.0
    %v182 = vadd.f32 %v174, 0.0
    %v183 = vadd.f32 %v175, 0.0
    %v184 = vadd.f32 %v176, 0.0
    %v185 = vadd.f32 %v177, 0.0
    %v186 = vadd.f32 %v178, 0.0
    %v187 = vadd.f32 %v179, 0.0
    %v188 = vadd.f32 %v180, 0.0
    %v189 = vld [vmem:[%s3] sm:$0xff]
    %v190 = vadd.f32 %v181, %v182
    %v191 = vadd.f32 %v190, %v183
    %v192 = vadd.f32 %v191, %v184
    %v193 = vadd.f32 %v189, %v192
    %194 = vst [vmem:[%s3] sm:$0xff] %v193
    %v195 = vld [vmem:[%s4] sm:$0xff]
    %v196 = vadd.f32 %v185, %v186
    %v197 = vadd.f32 %v196, %v187
    %v198 = vadd.f32 %v197, %v188
    %v199 = vadd.f32 %v195, %v198
    %200 = vst [vmem:[%s4] sm:$0xff] %v199
  $region21: #{loss_forward.1} parent=0 // pred_fallthru
    _
  %p201 = scmp.eq.s32.totalorder %s142, 0
  // Predicated region
  $region22: #{loss_forward.1} parent=0 // pred_check
    %p202 = pneg %p201
  $region23: #{loss_forward.1} parent=0 // pred_check_branch
    %204 = sbr.rel (%p202) target = $region25
  $region24: #{loss_forward.1} parent=0 // pred_region
    %v205 = vld [vmem:[%s103] sm:$0xff]
    %v206 = vld [vmem:[%s103 + $0x8] sm:$0xff]
    %v207 = vld [vmem:[%s103 + $0x10] sm:$0xff]
    %v208 = vld [vmem:[%s103 + $0x18] sm:$0xff]
    %v209 = vld [vmem:[%s119] sm:$0xff]
    %v210 = vld [vmem:[%s119 + $0x8] sm:$0xff]
    %v211 = vld [vmem:[%s119 + $0x10] sm:$0xff]
    %v212 = vld [vmem:[%s119 + $0x18] sm:$0xff]
    %v213 = vld [vmem:[%s135] sm:$0xff]
    %v214 = vld [vmem:[%s135 + $0x8] sm:$0xff]
    %v215 = vld [vmem:[%s135 + $0x10] sm:$0xff]
    %v216 = vld [vmem:[%s135 + $0x18] sm:$0xff]
    %v217 = vsub.f32 %v205, %v209
    %v218 = vsub.f32 %v206, %v210
    %v219 = vsub.f32 %v207, %v211
    %v220 = vsub.f32 %v208, %v212
    %v221 = vsub.f32 %v205, %v213
    %v222 = vsub.f32 %v206, %v214
    %v223 = vsub.f32 %v207, %v215
    %v224 = vsub.f32 %v208, %v216
    %v225 = vmul.f32 %v217, %v217
    %v226 = vmul.f32 %v218, %v218
    %v227 = vmul.f32 %v219, %v219
    %v228 = vmul.f32 %v220, %v220
    %v229 = vmul.f32 %v221, %v221
    %v230 = vmul.f32 %v222, %v222
    %v231 = vmul.f32 %v223, %v223
    %v232 = vmul.f32 %v224, %v224
    %s233 = smul.u32 %s142, 32
    %s234 = sadd.s32 %s233, 0
    %v235 = vlaneseq
    %v236 = vshrl.u32 %v235, 7
    %v237 = vadd.s32 %v236, 8
    %v238 = vadd.s32 %v236, 16
    %v239 = vadd.s32 %v236, 24
    %v240 = vstv %s234
    %v241 = vadd.s32 %v240, %v236
    %v242 = vadd.s32 %v240, %v237
    %v243 = vadd.s32 %v240, %v238
    %v244 = vadd.s32 %v240, %v239
    %vm245 = vcmp.lt.s32.totalorder %v241, 16
    %vm246 = vcmp.lt.s32.totalorder %v242, 16
    %vm247 = vcmp.lt.s32.totalorder %v243, 16
    %vm248 = vcmp.lt.s32.totalorder %v244, 16
    %v249 = vsel %vm245, 1, 0
    %v250 = vsel %vm246, 1, 0
    %v251 = vsel %vm247, 1, 0
    %v252 = vsel %vm248, 1, 0
    %vm253 = vcmp.eq.s32.totalorder %v249, 1
    %vm254 = vcmp.eq.s32.totalorder %v250, 1
    %vm255 = vcmp.eq.s32.totalorder %v251, 1
    %vm256 = vcmp.eq.s32.totalorder %v252, 1
    %v257 = vsel %vm253, %v225, 0.0
    %v258 = vsel %vm254, %v226, 0.0
    %v259 = vsel %vm255, %v227, 0.0
    %v260 = vsel %vm256, %v228, 0.0
    %v261 = vsel %vm253, %v229, 0.0
    %v262 = vsel %vm254, %v230, 0.0
    %v263 = vsel %vm255, %v231, 0.0
    %v264 = vsel %vm256, %v232, 0.0
    %v265 = vadd.f32 %v257, 0.0
    %v266 = vadd.f32 %v258, 0.0
    %v267 = vadd.f32 %v259, 0.0
    %v268 = vadd.f32 %v260, 0.0
    %v269 = vadd.f32 %v261, 0.0
    %v270 = vadd.f32 %v262, 0.0
    %v271 = vadd.f32 %v263, 0.0
    %v272 = vadd.f32 %v264, 0.0
    %v273 = vld [vmem:[%s3] sm:$0xff]
    %v274 = vadd.f32 %v265, %v266
    %v275 = vadd.f32 %v274, %v267
    %v276 = vadd.f32 %v275, %v268
    %v277 = vadd.f32 %v273, %v276
    %278 = vst [vmem:[%s3] sm:$0xff] %v277
    %v279 = vld [vmem:[%s4] sm:$0xff]
    %v280 = vadd.f32 %v269, %v270
    %v281 = vadd.f32 %v280, %v271
    %v282 = vadd.f32 %v281, %v272
    %v283 = vadd.f32 %v279, %v282
    %284 = vst [vmem:[%s4] sm:$0xff] %v283
  $region25: #{loss_forward.1} parent=0 // pred_fallthru
    _
  // Predicated region
  $region26: #{loss_forward.1} parent=0 // pred_check
    _
  $region27: #{loss_forward.1} parent=0 // pred_check_branch
    %286 = sbr.rel (0) target = $region29
  $region28: #{loss_forward.1} parent=0 // pred_region
    _
  $region29: #{loss_forward.1} parent=0 // pred_fallthru
    _
  // Predicated region
  $region30: #{loss_forward.1} parent=0 // pred_check
    _
  $region31: #{loss_forward.1} parent=0 // pred_check_branch
    %288 = sbr.rel (0) target = $region33
  $region32: #{loss_forward.1} parent=0 // pred_region
    _
  $region33: #{loss_forward.1} parent=0 // pred_fallthru
    _
  // Predicated region
  $region34: #{loss_forward.1} parent=0 // pred_check
    _
  $region35: #{loss_forward.1} parent=0 // pred_check_branch
    %290 = sbr.rel (0) target = $region37
  $region36: #{loss_forward.1} parent=0 // pred_region
    _
  $region37: #{loss_forward.1} parent=0 // pred_fallthru
    _
  // Predicated region
  $region38: #{loss_forward.1} parent=0 // pred_check
    _
  $region39: #{loss_forward.1} parent=0 // pred_check_branch
    %292 = sbr.rel (0) target = $region41
  $region40: #{loss_forward.1} parent=0 // pred_region
    _
  $region41: #{loss_forward.1} parent=0 // pred_fallthru
    _

</llo_original>
